<compile_context>
chip_gen: v7x
topology: tpu7x:2x2x1
jax: 0.10.0
libtpu: 0.0.40
codegen_flags: <defaults>
</compile_context>

<pallas_src>
import functools

import jax
import jax.numpy as jnp
from jax.experimental import pallas as pl
from jax.experimental.pallas import tpu as pltpu


def _color_mlp_kernel(x_ref, w1_ref, b1_ref, w2_ref, b2_ref, w3t_ref, b3_ref,
                      o_ref):
    # Layer 1: Linear + ReLU (bf16 MXU, f32 accumulate).
    x = x_ref[...].astype(jnp.bfloat16)
    h = jnp.dot(x, w1_ref[...], preferred_element_type=jnp.float32)
    h = jnp.maximum(h + b1_ref[...], 0.0).astype(jnp.bfloat16)
    # Layer 2: Linear + ReLU.
    h = jnp.dot(h, w2_ref[...], preferred_element_type=jnp.float32)
    h = jnp.maximum(h + b2_ref[...], 0.0).astype(jnp.bfloat16)
    # Layer 3 (color head), computed transposed (attention-style contraction):
    #   (C_PAD, hidden) . (tile_m, hidden)^T -> (C_PAD, tile_m)
    # Samples land on the lane axis -> lane-dense output stores and a small,
    # contiguous HBM writeback.
    logits_t = jax.lax.dot_general(
        w3t_ref[...], h,
        dimension_numbers=(((1,), (1,)), ((), ())),
        preferred_element_type=jnp.float32)
    o_ref[...] = jax.nn.sigmoid(logits_t + b3_ref[...]).astype(o_ref.dtype)


@functools.partial(jax.jit, static_argnames=("tile_m",))
def color_mlp_forward(x, w1, b1, w2, b2, w3t, b3, *, tile_m):
    """Fused color MLP. x: [N, d_in] -> [C_PAD, N] float32 (channel-major)."""
    n, d_in = x.shape
    hidden = w1.shape[1]
    c_pad = w3t.shape[0]
    grid = (pl.cdiv(n, tile_m),)

    # Weights/biases are tiny (~<20 KB bf16) and revisited every step, so they
    # stay resident in VMEM; default double-buffering of them is negligible.
    return pl.pallas_call(
        _color_mlp_kernel,
        out_shape=jax.ShapeDtypeStruct((c_pad, n), jnp.float32),
        grid_spec=pltpu.PrefetchScalarGridSpec(
            num_scalar_prefetch=0,
            grid=grid,
            in_specs=[
                pl.BlockSpec((tile_m, d_in), lambda i: (i, 0)),    # x tile
                pl.BlockSpec((d_in, hidden), lambda i: (0, 0)),    # W1 (resident)
                pl.BlockSpec((1, hidden), lambda i: (0, 0)),       # b1
                pl.BlockSpec((hidden, hidden), lambda i: (0, 0)),  # W2
                pl.BlockSpec((1, hidden), lambda i: (0, 0)),       # b2
                pl.BlockSpec((c_pad, hidden), lambda i: (0, 0)),   # W3^T (padded)
                pl.BlockSpec((c_pad, 1), lambda i: (0, 0)),        # b3 (padded)
            ],
            out_specs=pl.BlockSpec((c_pad, tile_m), lambda i: (0, i)),
        ),
        compiler_params=pltpu.CompilerParams(
            dimension_semantics=("parallel",)),
    )(x, w1, b1, w2, b2, w3t, b3)


def _choose_tile_m(n, d_in, max_tile=4096):
    """Big row-tiles amortize per-step overhead; keep >=4 grid steps for v7x
    megacore; cap the f32 x tile (~2 MiB per buffer) for VMEM headroom."""
    if n <= 128:
        return n  # single full-extent block (always satisfies tiling rules)
    cap = max(128, (2 * 1024 * 1024 // max(d_in * 4, 1)) // 128 * 128)
    max_tile = min(max_tile, cap)
    t = (n // 4) // 128 * 128          # aim for >= 4 grid steps
    return max(128, min(max_tile, t))


class BaseColorModelPallas:
    """JAX/Pallas equivalent of BaseColorModel: builds the color net and
    delegates forward(x, render_kwargs) to it."""

    def __init__(self, in_channels, out_channels, hidden=64, group="color"):
        self.group = group
        self.in_channels = in_channels
        self.color_channels = out_channels
        self.out_channels = self.color_channels
        self.cur_iter = 0
        # Pad output channels up to a full sublane group (8) for the
        # channel-major (C_PAD, N) kernel output.
        self.c_pad = max(8, -(-out_channels // 8) * 8)

        key = jax.random.PRNGKey(0)
        k1, k2, k3, k4, k5, k6 = jax.random.split(key, 6)
        scale1 = 1.0 / (in_channels ** 0.5)
        scale2 = 1.0 / (hidden ** 0.5)
        # Weights in bf16 (MXU-native path, half the weight footprint);
        # biases stay f32 (added to the f32 accumulator).
        self.w1 = jax.random.uniform(k1, (in_channels, hidden), jnp.float32,
                                     -scale1, scale1).astype(jnp.bfloat16)
        self.b1 = jax.random.uniform(k2, (1, hidden), jnp.float32,
                                     -scale1, scale1)
        self.w2 = jax.random.uniform(k3, (hidden, hidden), jnp.float32,
                                     -scale2, scale2).astype(jnp.bfloat16)
        self.b2 = jax.random.uniform(k4, (1, hidden), jnp.float32,
                                     -scale2, scale2)
        w3 = jax.random.uniform(k5, (hidden, out_channels), jnp.float32,
                                -scale2, scale2)
        b3 = jax.random.uniform(k6, (out_channels,), jnp.float32,
                                -scale2, scale2)
        # Store the color head transposed + channel-padded: (C_PAD, hidden).
        self.w3t = (jnp.zeros((self.c_pad, hidden), jnp.float32)
                    .at[:out_channels, :].set(w3.T)).astype(jnp.bfloat16)
        self.b3 = (jnp.zeros((self.c_pad, 1), jnp.float32)
                   .at[:out_channels, 0].set(b3))

    def set_iter(self, i):
        self.cur_iter = i  # net.set_iter(i) — no iteration-dependent compute here

    def __call__(self, x, render_kwargs=None):
        # x: Dict[str, array] — the color net consumes the ray/feature tensor.
        feats = x[self.group] if isinstance(x, dict) else x
        n, d_in = feats.shape
        tile_m = _choose_tile_m(n, d_in)
        out_cn = color_mlp_forward(feats, self.w1, self.b1, self.w2, self.b2,
                                   self.w3t, self.b3, tile_m=tile_m)
        # (C_PAD, N) channel-major -> (N, out_channels); tiny slice+transpose.
        return out_cn[: self.out_channels, :].T


def _reference_forward(model, feats):
    hp = jax.lax.Precision.HIGHEST
    f32 = jnp.float32
    x = feats.astype(jnp.bfloat16).astype(f32)
    w1, w2, w3t = (model.w1.astype(f32), model.w2.astype(f32),
                   model.w3t.astype(f32))
    h = jnp.maximum(jnp.dot(x, w1, precision=hp) + model.b1, 0.0)
    h = h.astype(jnp.bfloat16).astype(f32)
    h = jnp.maximum(jnp.dot(h, w2, precision=hp) + model.b2, 0.0)
    h = h.astype(jnp.bfloat16).astype(f32)
    logits = jnp.dot(h, w3t.T, precision=hp) + model.b3.T
    return jax.nn.sigmoid(logits)[:, :model.out_channels]


if __name__ == "__main__":
    in_channels = 32    # e.g. positionally/directionally encoded ray features
    out_channels = 3    # RGB color
    N = 256             # number of rays / samples (grid of 2 tiles here)

    key = jax.random.PRNGKey(0)
    feats = jax.random.normal(key, (N, in_channels), jnp.float32)

    model = BaseColorModelPallas(in_channels, out_channels, hidden=64)
    model.set_iter(0)

    x = {"color": feats}
    render_kwargs = {"fields": "color"}

    out = model(x, render_kwargs)
    out = jax.block_until_ready(out)

    ref = _reference_forward(model, feats)
    assert out.shape == (N, out_channels), out.shape
    err = float(jnp.max(jnp.abs(out - ref)))
    assert jnp.allclose(out, ref, atol=2e-3, rtol=2e-3), f"mismatch: {err}"

    print("KERNEL_OK")
</pallas_src>

<mosaic_0001>
module attributes {stable_mosaic.version = 11 : i64} {
  func.func @_color_mlp_kernel(%arg0: i32, %arg1: memref<128x32xf32, #tpu.memory_space<vmem>>, %arg2: memref<32x64xbf16, #tpu.memory_space<vmem>>, %arg3: memref<1x64xf32, #tpu.memory_space<vmem>>, %arg4: memref<64x64xbf16, #tpu.memory_space<vmem>>, %arg5: memref<1x64xf32, #tpu.memory_space<vmem>>, %arg6: memref<8x64xbf16, #tpu.memory_space<vmem>>, %arg7: memref<8x1xf32, #tpu.memory_space<vmem>>, %arg8: memref<8x128xf32, #tpu.memory_space<vmem>>) attributes {dimension_semantics = [#tpu.dimension_semantics<parallel>], iteration_bounds = array<i64: 2>, scalar_prefetch = 0 : i64, scratch_operands = 0 : i64, tpu.core_type = #tpu.core_type<tc>, window_params = [{transform_indices = @transform_0, window_bounds = array<i64: 128, 32>}, {pipeline_mode = #tpu.pipeline_mode<synchronous>, transform_indices = @transform_1, window_bounds = array<i64: 32, 64>}, {pipeline_mode = #tpu.pipeline_mode<synchronous>, transform_indices = @transform_2, window_bounds = array<i64: 1, 64>}, {pipeline_mode = #tpu.pipeline_mode<synchronous>, transform_indices = @transform_3, window_bounds = array<i64: 64, 64>}, {pipeline_mode = #tpu.pipeline_mode<synchronous>, transform_indices = @transform_4, window_bounds = array<i64: 1, 64>}, {pipeline_mode = #tpu.pipeline_mode<synchronous>, transform_indices = @transform_5, window_bounds = array<i64: 8, 64>}, {pipeline_mode = #tpu.pipeline_mode<synchronous>, transform_indices = @transform_6, window_bounds = array<i64: 8, 1>}, {transform_indices = @transform_7, window_bounds = array<i64: 8, 128>}]} {
    %c0 = arith.constant 0 : index
    %c0_0 = arith.constant 0 : index
    %0 = vector.load %arg1[%c0, %c0_0] : memref<128x32xf32, #tpu.memory_space<vmem>>, vector<128x32xf32>
    %1 = arith.truncf %0 : vector<128x32xf32> to vector<128x32xbf16>
    %c0_1 = arith.constant 0 : index
    %c0_2 = arith.constant 0 : index
    %2 = vector.load %arg2[%c0_1, %c0_2] : memref<32x64xbf16, #tpu.memory_space<vmem>>, vector<32x64xbf16>
    %cst = arith.constant dense<0.000000e+00> : vector<128x64xf32>
    %3 = tpu.matmul %1, %2, %cst {dimension_numbers = #tpu.dot_dimension_numbers<[1], [0], [0], [1], [0, 0, 1, 1], [], []>} : vector<128x32xbf16>, vector<32x64xbf16>, vector<128x64xf32> -> vector<128x64xf32>
    %c0_3 = arith.constant 0 : index
    %c0_4 = arith.constant 0 : index
    %4 = vector.load %arg3[%c0_3, %c0_4] : memref<1x64xf32, #tpu.memory_space<vmem>>, vector<1x64xf32>
    %5 = vector.broadcast %4 : vector<1x64xf32> to vector<128x64xf32>
    %6 = arith.addf %3, %5 : vector<128x64xf32>
    %cst_5 = arith.constant 0.000000e+00 : f32
    %7 = vector.broadcast %cst_5 : f32 to vector<128x64xf32>
    %8 = arith.maximumf %6, %7 : vector<128x64xf32>
    %9 = arith.truncf %8 : vector<128x64xf32> to vector<128x64xbf16>
    %c0_6 = arith.constant 0 : index
    %c0_7 = arith.constant 0 : index
    %10 = vector.load %arg4[%c0_6, %c0_7] : memref<64x64xbf16, #tpu.memory_space<vmem>>, vector<64x64xbf16>
    %cst_8 = arith.constant dense<0.000000e+00> : vector<128x64xf32>
    %11 = tpu.matmul %9, %10, %cst_8 {dimension_numbers = #tpu.dot_dimension_numbers<[1], [0], [0], [1], [0, 0, 1, 1], [], []>} : vector<128x64xbf16>, vector<64x64xbf16>, vector<128x64xf32> -> vector<128x64xf32>
    %c0_9 = arith.constant 0 : index
    %c0_10 = arith.constant 0 : index
    %12 = vector.load %arg5[%c0_9, %c0_10] : memref<1x64xf32, #tpu.memory_space<vmem>>, vector<1x64xf32>
    %13 = vector.broadcast %12 : vector<1x64xf32> to vector<128x64xf32>
    %14 = arith.addf %11, %13 : vector<128x64xf32>
    %cst_11 = arith.constant 0.000000e+00 : f32
    %15 = vector.broadcast %cst_11 : f32 to vector<128x64xf32>
    %16 = arith.maximumf %14, %15 : vector<128x64xf32>
    %17 = arith.truncf %16 : vector<128x64xf32> to vector<128x64xbf16>
    %c0_12 = arith.constant 0 : index
    %c0_13 = arith.constant 0 : index
    %18 = vector.load %arg6[%c0_12, %c0_13] : memref<8x64xbf16, #tpu.memory_space<vmem>>, vector<8x64xbf16>
    %cst_14 = arith.constant dense<0.000000e+00> : vector<8x128xf32>
    %19 = tpu.matmul %18, %17, %cst_14 {dimension_numbers = #tpu.dot_dimension_numbers<[1], [1], [0], [0], [0, 0, 1, 0], [], []>} : vector<8x64xbf16>, vector<128x64xbf16>, vector<8x128xf32> -> vector<8x128xf32>
    %c0_15 = arith.constant 0 : index
    %c0_16 = arith.constant 0 : index
    %20 = vector.load %arg7[%c0_15, %c0_16] : memref<8x1xf32, #tpu.memory_space<vmem>>, vector<8x1xf32>
    %21 = vector.broadcast %20 : vector<8x1xf32> to vector<8x128xf32>
    %22 = arith.addf %19, %21 : vector<8x128xf32>
    %23 = arith.negf %22 : vector<8x128xf32>
    %24 = math.exp %23 : vector<8x128xf32>
    %cst_17 = arith.constant 1.000000e+00 : f32
    %25 = vector.broadcast %cst_17 : f32 to vector<8x128xf32>
    %26 = arith.addf %25, %24 : vector<8x128xf32>
    %27 = arith.divf %25, %26 : vector<8x128xf32>
    %c0_18 = arith.constant 0 : index
    %c0_19 = arith.constant 0 : index
    %28 = vector.load %arg8[%c0_18, %c0_19] : memref<8x128xf32, #tpu.memory_space<vmem>>, vector<8x128xf32>
    tpu.vector_store %arg8[%c0_18, %c0_19], %27 {strides = array<i32>} : memref<8x128xf32, #tpu.memory_space<vmem>>, vector<8x128xf32>,
    return
  }
  func.func @transform_0(%arg0: i32) -> (i32, i32) {
    %c0_i32 = arith.constant 0 : i32
    %c0_i32_0 = arith.constant 0 : i32
    return %arg0, %c0_i32 : i32, i32
  }
  func.func @transform_1(%arg0: i32) -> (i32, i32) {
    %c0_i32 = arith.constant 0 : i32
    %c0_i32_0 = arith.constant 0 : i32
    %c0_i32_1 = arith.constant 0 : i32
    return %c0_i32, %c0_i32_0 : i32, i32
  }
  func.func @transform_2(%arg0: i32) -> (i32, i32) {
    %c0_i32 = arith.constant 0 : i32
    %c0_i32_0 = arith.constant 0 : i32
    %c0_i32_1 = arith.constant 0 : i32
    return %c0_i32, %c0_i32_0 : i32, i32
  }
  func.func @transform_3(%arg0: i32) -> (i32, i32) {
    %c0_i32 = arith.constant 0 : i32
    %c0_i32_0 = arith.constant 0 : i32
    %c0_i32_1 = arith.constant 0 : i32
    return %c0_i32, %c0_i32_0 : i32, i32
  }
  func.func @transform_4(%arg0: i32) -> (i32, i32) {
    %c0_i32 = arith.constant 0 : i32
    %c0_i32_0 = arith.constant 0 : i32
    %c0_i32_1 = arith.constant 0 : i32
    return %c0_i32, %c0_i32_0 : i32, i32
  }
  func.func @transform_5(%arg0: i32) -> (i32, i32) {
    %c0_i32 = arith.constant 0 : i32
    %c0_i32_0 = arith.constant 0 : i32
    %c0_i32_1 = arith.constant 0 : i32
    return %c0_i32, %c0_i32_0 : i32, i32
  }
  func.func @transform_6(%arg0: i32) -> (i32, i32) {
    %c0_i32 = arith.constant 0 : i32
    %c0_i32_0 = arith.constant 0 : i32
    %c0_i32_1 = arith.constant 0 : i32
    return %c0_i32, %c0_i32_0 : i32, i32
  }
  func.func @transform_7(%arg0: i32) -> (i32, i32) {
    %c0_i32 = arith.constant 0 : i32
    %c0_i32_0 = arith.constant 0 : i32
    return %c0_i32, %arg0 : i32, i32
  }
}

</mosaic_0001>

<llo_original>
// kernel: color_mlp_forward.1
$region0: #{color_mlp_forward.1}
  #allocation0 [shape = 'u32[]', space=smem, size = 0x4, offset = 0x4, fixed_abs, tag = 'smem constant byte address 0x4 - core index']
  #allocation1 [shape = 'u32[144,128]{1,0:T(1,128)}', space=vmem, size = 0x12000, scoped, tag = 'internal scratch']
  %s0 = inlined_call_operand.vmem [shape: f32[256,32], index: 0, kind: input, shape index: {}]
  %s1 = inlined_call_operand.vmem [shape: bf16[32,64], index: 1, kind: input, shape index: {}]
  %s2 = inlined_call_operand.vmem [shape: f32[1,64], index: 2, kind: input, shape index: {}]
  %s3 = inlined_call_operand.vmem [shape: bf16[64,64], index: 3, kind: input, shape index: {}]
  %s4 = inlined_call_operand.vmem [shape: f32[1,64], index: 4, kind: input, shape index: {}]
  %s5 = inlined_call_operand.vmem [shape: bf16[8,64], index: 5, kind: input, shape index: {}]
  %s6 = inlined_call_operand.vmem [shape: f32[8,1], index: 6, kind: input, shape index: {}]
  %s7 = inlined_call_operand.hbm [shape: f32[8,256], index: 7, kind: output, shape index: {}]
  %s8 = sld [smem:[#allocation0]]
  $region61: #{color_mlp_forward.1} parent=0
    _
  %s10 = ssub.s32 1, %s8
  %s11 = scalar_select 0, %s10, %s8
  $region1: #{color_mlp_forward.1} parent=0
    #allocation2 [shape = 'u8[8192]{0}', space=vmem, size = 0x2000, scoped, tag = 'output window, operand 0']
    #allocation3 [shape = 's32[2]{0}', space=sflag, size = 0x8, scoped, tag = 'scoped memory for color_mlp_forward.1']
    %12 = vsyncpa [#allocation3], 0
    %s13 = scalar_lea.sflag [#allocation3], 1
    %14 = vsyncpa %s13, 0
    loop: start=0, step=1, limit=4
    $region2: #{color_mlp_forward.1} parent=1 // loop_pre_header
      _
    $region3: #{color_mlp_forward.1} parent=1 // loop_header
      %s16 = sphi 0, %s20
      %p17 = scmp.ge.s32.totalorder %s16, 4
      %s26 = sphi 0, %s28
      %s29 = sphi 0, %s26
      %s30 = sphi 0, %s29
      %s46 = sphi 0, %s30
      %s50 = sphi 0, %s50
      %s52 = sphi 0, %s50
      %s53 = sphi 0, %s52
      %s67 = sphi 0, %s53
      %s71 = sphi 0, %s71
      %s73 = sphi 0, %s71
      %s74 = sphi 0, %s73
      %s88 = sphi 0, %s74
      %s92 = sphi 0, %s92
      %s94 = sphi 0, %s92
      %s95 = sphi 0, %s94
      %s109 = sphi 0, %s95
      %s113 = sphi 0, %s113
      %s115 = sphi 0, %s113
      %s116 = sphi 0, %s115
      %s130 = sphi 0, %s116
      %s134 = sphi 0, %s134
      %s136 = sphi 0, %s134
      %s137 = sphi 0, %s136
      %s151 = sphi 0, %s137
      %s155 = sphi 0, %s155
      %s157 = sphi 0, %s155
      %s158 = sphi 0, %s157
      %s172 = sphi 0, %s158
      %s178 = sphi 0, %s180
      %s181 = sphi 0, %s178
      %s182 = sphi 0, %s181
      %s198 = sphi 0, %s182
    $region4: #{color_mlp_forward.1} parent=1 // loop_header_branch
      %19 = sbr.rel (%p17) target = $region8
    $region5: #{color_mlp_forward.1} parent=1 // loop_body
      %s21 = ssub.s32 %s16, 1
      %s22 = ssub.s32 %s16, 2
      %s23 = sadd.s32 %s16, 1
      %s24 = ssub.s32 %s16, %s23
      %p25 = scmp.eq.s32.totalorder %s24, 0
      %s27 = sadd.s32 %s26, 1
      %s28 = scalar_select %p25, %s26, %s27
      %p31 = pneg %p25
      %p32 = scmp.eq.s32.totalorder %s16, 1
      %p33 = por %p31, %p32
      %p34 = scmp.ne.s32.totalorder %s26, %s29
      %p35 = scmp.eq.s32.totalorder %s16, 0
      %p36 = por %p34, %p35
      %p37 = scmp.ne.s32.totalorder %s26, %s29
      %p38 = scmp.eq.s32.totalorder %s21, 1
      %p39 = por %p37, %p38
      %p40 = scmp.ne.s32.totalorder %s29, %s30
      %p41 = scmp.eq.s32.totalorder %s21, 0
      %p42 = por %p40, %p41
      %p43 = scmp.ne.s32.totalorder %s29, %s30
      %p44 = scmp.eq.s32.totalorder %s22, 1
      %p45 = por %p43, %p44
      %p47 = scmp.ne.s32.totalorder %s30, %s46
      %p48 = scmp.eq.s32.totalorder %s22, 0
      %p49 = por %p47, %p48
      %s51 = sadd.s32 %s50, 1
      %p54 = scmp.eq.s32.totalorder %s16, 1
      %p55 = scmp.ne.s32.totalorder %s50, %s52
      %p56 = scmp.eq.s32.totalorder %s16, 0
      %p57 = por %p55, %p56
      %p58 = scmp.ne.s32.totalorder %s50, %s52
      %p59 = scmp.eq.s32.totalorder %s21, 1
      %p60 = por %p58, %p59
      %p61 = scmp.ne.s32.totalorder %s52, %s53
      %p62 = scmp.eq.s32.totalorder %s21, 0
      %p63 = por %p61, %p62
      %p64 = scmp.ne.s32.totalorder %s52, %s53
      %p65 = scmp.eq.s32.totalorder %s22, 1
      %p66 = por %p64, %p65
      %p68 = scmp.ne.s32.totalorder %s53, %s67
      %p69 = scmp.eq.s32.totalorder %s22, 0
      %p70 = por %p68, %p69
      %s72 = sadd.s32 %s71, 1
      %p75 = scmp.eq.s32.totalorder %s16, 1
      %p76 = scmp.ne.s32.totalorder %s71, %s73
      %p77 = scmp.eq.s32.totalorder %s16, 0
      %p78 = por %p76, %p77
      %p79 = scmp.ne.s32.totalorder %s71, %s73
      %p80 = scmp.eq.s32.totalorder %s21, 1
      %p81 = por %p79, %p80
      %p82 = scmp.ne.s32.totalorder %s73, %s74
      %p83 = scmp.eq.s32.totalorder %s21, 0
      %p84 = por %p82, %p83
      %p85 = scmp.ne.s32.totalorder %s73, %s74
      %p86 = scmp.eq.s32.totalorder %s22, 1
      %p87 = por %p85, %p86
      %p89 = scmp.ne.s32.totalorder %s74, %s88
      %p90 = scmp.eq.s32.totalorder %s22, 0
      %p91 = por %p89, %p90
      %s93 = sadd.s32 %s92, 1
      %p96 = scmp.eq.s32.totalorder %s16, 1
      %p97 = scmp.ne.s32.totalorder %s92, %s94
      %p98 = scmp.eq.s32.totalorder %s16, 0
      %p99 = por %p97, %p98
      %p100 = scmp.ne.s32.totalorder %s92, %s94
      %p101 = scmp.eq.s32.totalorder %s21, 1
      %p102 = por %p100, %p101
      %p103 = scmp.ne.s32.totalorder %s94, %s95
      %p104 = scmp.eq.s32.totalorder %s21, 0
      %p105 = por %p103, %p104
      %p106 = scmp.ne.s32.totalorder %s94, %s95
      %p107 = scmp.eq.s32.totalorder %s22, 1
      %p108 = por %p106, %p107
      %p110 = scmp.ne.s32.totalorder %s95, %s109
      %p111 = scmp.eq.s32.totalorder %s22, 0
      %p112 = por %p110, %p111
      %s114 = sadd.s32 %s113, 1
      %p117 = scmp.eq.s32.totalorder %s16, 1
      %p118 = scmp.ne.s32.totalorder %s113, %s115
      %p119 = scmp.eq.s32.totalorder %s16, 0
      %p120 = por %p118, %p119
      %p121 = scmp.ne.s32.totalorder %s113, %s115
      %p122 = scmp.eq.s32.totalorder %s21, 1
      %p123 = por %p121, %p122
      %p124 = scmp.ne.s32.totalorder %s115, %s116
      %p125 = scmp.eq.s32.totalorder %s21, 0
      %p126 = por %p124, %p125
      %p127 = scmp.ne.s32.totalorder %s115, %s116
      %p128 = scmp.eq.s32.totalorder %s22, 1
      %p129 = por %p127, %p128
      %p131 = scmp.ne.s32.totalorder %s116, %s130
      %p132 = scmp.eq.s32.totalorder %s22, 0
      %p133 = por %p131, %p132
      %s135 = sadd.s32 %s134, 1
      %p138 = scmp.eq.s32.totalorder %s16, 1
      %p139 = scmp.ne.s32.totalorder %s134, %s136
      %p140 = scmp.eq.s32.totalorder %s16, 0
      %p141 = por %p139, %p140
      %p142 = scmp.ne.s32.totalorder %s134, %s136
      %p143 = scmp.eq.s32.totalorder %s21, 1
      %p144 = por %p142, %p143
      %p145 = scmp.ne.s32.totalorder %s136, %s137
      %p146 = scmp.eq.s32.totalorder %s21, 0
      %p147 = por %p145, %p146
      %p148 = scmp.ne.s32.totalorder %s136, %s137
      %p149 = scmp.eq.s32.totalorder %s22, 1
      %p150 = por %p148, %p149
      %p152 = scmp.ne.s32.totalorder %s137, %s151
      %p153 = scmp.eq.s32.totalorder %s22, 0
      %p154 = por %p152, %p153
      %s156 = sadd.s32 %s155, 1
      %p159 = scmp.eq.s32.totalorder %s16, 1
      %p160 = scmp.ne.s32.totalorder %s155, %s157
      %p161 = scmp.eq.s32.totalorder %s16, 0
      %p162 = por %p160, %p161
      %p163 = scmp.ne.s32.totalorder %s155, %s157
      %p164 = scmp.eq.s32.totalorder %s21, 1
      %p165 = por %p163, %p164
      %p166 = scmp.ne.s32.totalorder %s157, %s158
      %p167 = scmp.eq.s32.totalorder %s21, 0
      %p168 = por %p166, %p167
      %p169 = scmp.ne.s32.totalorder %s157, %s158
      %p170 = scmp.eq.s32.totalorder %s22, 1
      %p171 = por %p169, %p170
      %p173 = scmp.ne.s32.totalorder %s158, %s172
      %p174 = scmp.eq.s32.totalorder %s22, 0
      %p175 = por %p173, %p174
      %s176 = ssub.s32 %s16, %s23
      %p177 = scmp.eq.s32.totalorder %s176, 0
      %s179 = sadd.s32 %s178, 1
      %s180 = scalar_select %p177, %s178, %s179
      %p183 = pneg %p177
      %p184 = scmp.eq.s32.totalorder %s16, 1
      %p185 = por %p183, %p184
      %p186 = scmp.ne.s32.totalorder %s178, %s181
      %p187 = scmp.eq.s32.totalorder %s16, 0
      %p188 = por %p186, %p187
      %p189 = scmp.ne.s32.totalorder %s178, %s181
      %p190 = scmp.eq.s32.totalorder %s21, 1
      %p191 = por %p189, %p190
      %p192 = scmp.ne.s32.totalorder %s181, %s182
      %p193 = scmp.eq.s32.totalorder %s21, 0
      %p194 = por %p192, %p193
      %p195 = scmp.ne.s32.totalorder %s181, %s182
      %p196 = scmp.eq.s32.totalorder %s22, 1
      %p197 = por %p195, %p196
      %p199 = scmp.ne.s32.totalorder %s182, %s198
      %p200 = scmp.eq.s32.totalorder %s22, 0
      %p201 = por %p199, %p200
      %p202 = scmp.le.s32.totalorder 1, %s16
      %p203 = scmp.lt.s32.totalorder %s16, 3
      %p204 = pnand %p202, %p203
      %p205 = pneg %p204
      // Predicated region
      $region9: #{color_mlp_forward.1} parent=5 // pred_check
        _
      $region10: #{color_mlp_forward.1} parent=5 // pred_check_branch
        %207 = sbr.rel (%p204) target = $region12
      $region11: #{color_mlp_forward.1} parent=5 // pred_region
        %s208 = ssub.s32 %s16, 1
        // Predicated region
        $region13: #{color_mlp_forward.1} parent=11 // pred_check
          %p209 = pneg %p63
        $region14: #{color_mlp_forward.1} parent=11 // pred_check_branch
          %211 = sbr.rel (%p209) target = $region16
        $region15: #{color_mlp_forward.1} parent=11 // pred_region
          _
        $region16: #{color_mlp_forward.1} parent=11 // pred_fallthru
          _
        // Predicated region
        $region17: #{color_mlp_forward.1} parent=11 // pred_check
          %p212 = pneg %p84
        $region18: #{color_mlp_forward.1} parent=11 // pred_check_branch
          %214 = sbr.rel (%p212) target = $region20
        $region19: #{color_mlp_forward.1} parent=11 // pred_region
          _
        $region20: #{color_mlp_forward.1} parent=11 // pred_fallthru
          _
        // Predicated region
        $region21: #{color_mlp_forward.1} parent=11 // pred_check
          %p215 = pneg %p105
        $region22: #{color_mlp_forward.1} parent=11 // pred_check_branch
          %217 = sbr.rel (%p215) target = $region24
        $region23: #{color_mlp_forward.1} parent=11 // pred_region
          _
        $region24: #{color_mlp_forward.1} parent=11 // pred_fallthru
          _
        // Predicated region
        $region25: #{color_mlp_forward.1} parent=11 // pred_check
          %p218 = pneg %p126
        $region26: #{color_mlp_forward.1} parent=11 // pred_check_branch
          %220 = sbr.rel (%p218) target = $region28
        $region27: #{color_mlp_forward.1} parent=11 // pred_region
          _
        $region28: #{color_mlp_forward.1} parent=11 // pred_fallthru
          _
        // Predicated region
        $region29: #{color_mlp_forward.1} parent=11 // pred_check
          %p221 = pneg %p147
        $region30: #{color_mlp_forward.1} parent=11 // pred_check_branch
          %223 = sbr.rel (%p221) target = $region32
        $region31: #{color_mlp_forward.1} parent=11 // pred_region
          _
        $region32: #{color_mlp_forward.1} parent=11 // pred_fallthru
          _
        // Predicated region
        $region33: #{color_mlp_forward.1} parent=11 // pred_check
          %p224 = pneg %p168
        $region34: #{color_mlp_forward.1} parent=11 // pred_check_branch
          %226 = sbr.rel (%p224) target = $region36
        $region35: #{color_mlp_forward.1} parent=11 // pred_region
          _
        $region36: #{color_mlp_forward.1} parent=11 // pred_fallthru
          _
      $region12: #{color_mlp_forward.1} parent=5 // pred_fallthru
        _
      %p227 = scmp.lt.s32.totalorder %s16, 2
      // Predicated region
      $region37: #{color_mlp_forward.1} parent=5 // pred_check
        %p228 = pneg %p227
      $region38: #{color_mlp_forward.1} parent=5 // pred_check_branch
        %230 = sbr.rel (%p228) target = $region40
      $region39: #{color_mlp_forward.1} parent=5 // pred_region
        // Predicated region
        $region41: #{color_mlp_forward.1} parent=39 // pred_check
          %p231 = pneg %p36
        $region42: #{color_mlp_forward.1} parent=39 // pred_check_branch
          %233 = sbr.rel (%p231) target = $region44
        $region43: #{color_mlp_forward.1} parent=39 // pred_region
          %s234 = smul.u32 16, %s16
          %p235 = scmp.lt.s32.totalorder %s234, 31
          %s236 = scalar_select %p235, %s234, 31
          %s237 = smul.addr %s236, 8
          %s238 = scalar_lea.vmem %s0, %s237
          %s239 = smul.u32 16, %s16
        $region44: #{color_mlp_forward.1} parent=39 // pred_fallthru
          _
      $region40: #{color_mlp_forward.1} parent=5 // pred_fallthru
        _
      %p240 = scmp.le.s32.totalorder 1, %s16
      %p241 = scmp.lt.s32.totalorder %s16, 3
      %p242 = pnand %p240, %p241
      %p243 = pneg %p242
      // Predicated region
      $region45: #{color_mlp_forward.1} parent=5 // pred_check
        _
      $region46: #{color_mlp_forward.1} parent=5 // pred_check_branch
        %245 = sbr.rel (%p242) target = $region48
      $region47: #{color_mlp_forward.1} parent=5 // pred_region
        %s246 = ssub.s32 %s16, 1
        %s247 = smul.u32 16, %s21
        %p248 = scmp.lt.s32.totalorder %s247, 31
        %s249 = scalar_select %p248, %s247, 31
        %s250 = smul.addr %s249, 8
        %s251 = scalar_lea.vmem %s0, %s250
        %p252 = pneg %p42
        %p253 = pneg %p39
        %p254 = pneg %p63
        %p255 = pneg %p60
        %p256 = pneg %p84
        %p257 = pneg %p81
        %p258 = pneg %p105
        %p259 = pneg %p102
        %p260 = pneg %p126
        %p261 = pneg %p123
        %p262 = pneg %p147
        %p263 = pneg %p144
        %p264 = pneg %p168
        %p265 = pneg %p165
        %p266 = pneg %p194
        %p267 = pneg %p191
        %s268 = sand.u32 %s181, 1
        %s269 = scalar_lea.sflag [#allocation3], %s268
        %s270 = sand.u32 %s181, 1
        %s271 = smul.addr %s270, 8
        %s272 = scalar_lea.vmem [#allocation2], %s271
        %s273 = smul.u32 16, %s21
        %p274 = scmp.lt.s32.totalorder %s273, 31
        %s275 = scalar_select %p274, %s273, 31
        %s276 = smul.addr %s275, 8
        %s277 = scalar_lea.vmem %s0, %s276
        %s278 = smul.u32 16, %s21
        %v280 = vld [vmem:[%s277] sm:$0xff]
        %v281 = vld [vmem:[%s277 + $0x8] sm:$0xff]
        %v282 = vld [vmem:[%s277 + $0x10] sm:$0xff]
        %v283 = vld [vmem:[%s277 + $0x18] sm:$0xff]
        %v284 = vld [vmem:[%s277 + $0x20] sm:$0xff]
        %v285 = vld [vmem:[%s277 + $0x28] sm:$0xff]
        %v286 = vld [vmem:[%s277 + $0x30] sm:$0xff]
        %v287 = vld [vmem:[%s277 + $0x38] sm:$0xff]
        %v288 = vld [vmem:[%s277 + $0x40] sm:$0xff]
        %v289 = vld [vmem:[%s277 + $0x48] sm:$0xff]
        %v290 = vld [vmem:[%s277 + $0x50] sm:$0xff]
        %v291 = vld [vmem:[%s277 + $0x58] sm:$0xff]
        %v292 = vld [vmem:[%s277 + $0x60] sm:$0xff]
        %v293 = vld [vmem:[%s277 + $0x68] sm:$0xff]
        %v294 = vld [vmem:[%s277 + $0x70] sm:$0xff]
        %v295 = vld [vmem:[%s277 + $0x78] sm:$0xff]
        %v296 = vpack.c.bf16 %v281, %v280
        %v297 = vpack.c.bf16 %v283, %v282
        %v298 = vpack.c.bf16 %v285, %v284
        %v299 = vpack.c.bf16 %v287, %v286
        %v300 = vpack.c.bf16 %v289, %v288
        %v301 = vpack.c.bf16 %v291, %v290
        %v302 = vpack.c.bf16 %v293, %v292
        %v303 = vpack.c.bf16 %v295, %v294
        %v304 = vld [vmem:[%s1] sm:$0xf]
        %v305 = vld [vmem:[%s1 + $0x4] sm:$0xf]
        %v306 = vld [vmem:[%s1 + $0x8] sm:$0xf]
        %v307 = vld [vmem:[%s1 + $0xc] sm:$0xf]
        %v308 = vld [vmem:[%s2] sm:$0x1]
        %v310 = vlaneseq
        %v311 = vshrl.u32 %v310, 7
        %v312 = vsub.s32 0, %v311
        %v313 = vrot.slane %v308, %v312
        %v319 = vunpack.c.l.b16 %v304
        %v320 = vunpack.c.l.b16 %v305
        %v321 = vunpack.c.l.b16 %v306
        %v322 = vunpack.c.l.b16 %v307
        %v323 = vpack.c.b16 %v320, %v319
        %v324 = vpack.c.b16 %v322, %v321
        %vm327 = vcmask 261120
        %v329 = vsel %vm327, %v296, 0
        %v332 = vsel %vm327, %v297, 0
        %v335 = vsel %vm327, %v298, 0
        %v338 = vsel %vm327, %v299, 0
        %v341 = vsel %vm327, %v300, 0
        %v344 = vsel %vm327, %v301, 0
        %v347 = vsel %vm327, %v302, 0
        %v350 = vsel %vm327, %v303, 0
        %352 = vmatprep.subr.bf16.mxu0 0
        %353 = vmatpush1.bf16.msra.mxu0 %v323
        %354 = vmatprep.subr.bf16.mxu0 0
        %355 = vmatpush1.bf16.msra.mxu0 %v324
        %356 = vmatprep.subr.bf16.mxu0 0
        %357 = vmatpush1.bf16.msra.mxu0 0
        %358 = vmatprep.subr.bf16.mxu0 0
        %359 = vmatpush1.bf16.msra.mxu0 0
        %360 = vmatprep.subr.bf16.mxu0 0
        %361 = vmatpush1.bf16.msra.mxu0 0
        %362 = vmatprep.subr.bf16.mxu0 0
        %363 = vmatpush1.bf16.msra.mxu0 0
        %364 = vmatprep.subr.bf16.mxu0 0
        %365 = vmatpush1.bf16.msra.mxu0 0
        %366 = vmatprep.subr.bf16.mxu0 0
        %367 = vmatpush1.bf16.msra.mxu0 0
        %368 = vmatprep.subr.bf16.mxu0 0
        %369 = vmatpush1.bf16.msra.mxu0 0
        %370 = vmatprep.subr.bf16.mxu0 0
        %371 = vmatpush1.bf16.msra.mxu0 0
        %372 = vmatprep.subr.bf16.mxu0 0
        %373 = vmatpush1.bf16.msra.mxu0 0
        %374 = vmatprep.subr.bf16.mxu0 0
        %375 = vmatpush1.bf16.msra.mxu0 0
        %376 = vmatprep.subr.bf16.mxu0 0
        %377 = vmatpush1.bf16.msra.mxu0 0
        %378 = vmatprep.subr.bf16.mxu0 0
        %379 = vmatpush1.bf16.msra.mxu0 0
        %380 = vmatprep.subr.bf16.mxu0 0
        %381 = vmatpush1.bf16.msra.mxu0 0
        %382 = vmatprep.subr.bf16.mxu0 0
        %383 = vmatpush1.bf16.msra.mxu0 0
        %384 = vmatprep.mubr.bf16.mxu0 0
        %385 = vmatmul.mubr.bf16.gmra.mrb[0].mxu0 %v329
        %v386 = vpop.f32.mrb[0].mxu0
        %v387 = vadd.f32 %v313, %v386
        %v388 = vpop.f32.mrb[0].mxu0
        %v389 = vpop.f32.mrb[0].mxu0
        %v390 = vadd.f32 %v313, %v389
        %v391 = vpop.f32.mrb[0].mxu0
        %392 = vmatprep.mubr.bf16.mxu0 0
        %393 = vmatmul.mubr.bf16.gmra.mrb[0].mxu0 %v332
        %v394 = vpop.f32.mrb[0].mxu0
        %v395 = vadd.f32 %v313, %v394
        %v396 = vpop.f32.mrb[0].mxu0
        %v397 = vpop.f32.mrb[0].mxu0
        %v398 = vadd.f32 %v313, %v397
        %v399 = vpop.f32.mrb[0].mxu0
        %400 = vmatprep.mubr.bf16.mxu0 0
        %401 = vmatmul.mubr.bf16.gmra.mrb[0].mxu0 %v335
        %v402 = vpop.f32.mrb[0].mxu0
        %v403 = vadd.f32 %v313, %v402
        %v404 = vpop.f32.mrb[0].mxu0
        %v405 = vpop.f32.mrb[0].mxu0
        %v406 = vadd.f32 %v313, %v405
        %v407 = vpop.f32.mrb[0].mxu0
        %408 = vmatprep.mubr.bf16.mxu0 0
        %409 = vmatmul.mubr.bf16.gmra.mrb[0].mxu0 %v338
        %v410 = vpop.f32.mrb[0].mxu0
        %v411 = vadd.f32 %v313, %v410
        %v412 = vpop.f32.mrb[0].mxu0
        %v413 = vpop.f32.mrb[0].mxu0
        %v414 = vadd.f32 %v313, %v413
        %v415 = vpop.f32.mrb[0].mxu0
        %416 = vmatprep.mubr.bf16.mxu0 0
        %417 = vmatmul.mubr.bf16.gmra.mrb[0].mxu0 %v341
        %v418 = vpop.f32.mrb[0].mxu0
        %v419 = vadd.f32 %v313, %v418
        %v420 = vpop.f32.mrb[0].mxu0
        %v421 = vpop.f32.mrb[0].mxu0
        %v422 = vadd.f32 %v313, %v421
        %v423 = vpop.f32.mrb[0].mxu0
        %424 = vmatprep.mubr.bf16.mxu0 0
        %425 = vmatmul.mubr.bf16.gmra.mrb[0].mxu0 %v344
        %v426 = vpop.f32.mrb[0].mxu0
        %v427 = vadd.f32 %v313, %v426
        %v428 = vpop.f32.mrb[0].mxu0
        %v429 = vpop.f32.mrb[0].mxu0
        %v430 = vadd.f32 %v313, %v429
        %v431 = vpop.f32.mrb[0].mxu0
        %432 = vmatprep.mubr.bf16.mxu0 0
        %433 = vmatmul.mubr.bf16.gmra.mrb[0].mxu0 %v347
        %v434 = vpop.f32.mrb[0].mxu0
        %v435 = vadd.f32 %v313, %v434
        %v436 = vpop.f32.mrb[0].mxu0
        %v437 = vpop.f32.mrb[0].mxu0
        %v438 = vadd.f32 %v313, %v437
        %v439 = vpop.f32.mrb[0].mxu0
        %440 = vmatprep.mubr.bf16.mxu0 0
        %441 = vmatmul.mubr.bf16.gmra.mrb[0].mxu0 %v350
        %v442 = vpop.f32.mrb[0].mxu0
        %v443 = vadd.f32 %v313, %v442
        %v444 = vpop.f32.mrb[0].mxu0
        %v445 = vpop.f32.mrb[0].mxu0
        %v446 = vadd.f32 %v313, %v445
        %v447 = vpop.f32.mrb[0].mxu0
        %448 = vdwg.mxu0
        %v449 = vmax.f32 %v387, 0.0
        %v450 = vmax.f32 %v390, 0.0
        %v451 = vmax.f32 %v395, 0.0
        %v452 = vmax.f32 %v398, 0.0
        %v453 = vmax.f32 %v403, 0.0
        %v454 = vmax.f32 %v406, 0.0
        %v455 = vmax.f32 %v411, 0.0
        %v456 = vmax.f32 %v414, 0.0
        %v457 = vmax.f32 %v419, 0.0
        %v458 = vmax.f32 %v422, 0.0
        %v459 = vmax.f32 %v427, 0.0
        %v460 = vmax.f32 %v430, 0.0
        %v461 = vmax.f32 %v435, 0.0
        %v462 = vmax.f32 %v438, 0.0
        %v463 = vmax.f32 %v443, 0.0
        %v464 = vmax.f32 %v446, 0.0
        %v465 = vpack.c.bf16 %v450, %v449
        %v466 = vpack.c.bf16 %v452, %v451
        %v467 = vpack.c.bf16 %v454, %v453
        %v468 = vpack.c.bf16 %v456, %v455
        %v469 = vpack.c.bf16 %v458, %v457
        %v470 = vpack.c.bf16 %v460, %v459
        %v471 = vpack.c.bf16 %v462, %v461
        %v472 = vpack.c.bf16 %v464, %v463
        %v473 = vld [vmem:[%s3] sm:$0xf]
        %v474 = vld [vmem:[%s3 + $0x4] sm:$0xf]
        %v475 = vld [vmem:[%s3 + $0x8] sm:$0xf]
        %v476 = vld [vmem:[%s3 + $0xc] sm:$0xf]
        %v477 = vld [vmem:[%s3 + $0x10] sm:$0xf]
        %v478 = vld [vmem:[%s3 + $0x14] sm:$0xf]
        %v479 = vld [vmem:[%s3 + $0x18] sm:$0xf]
        %v480 = vld [vmem:[%s3 + $0x1c] sm:$0xf]
        %v481 = vld [vmem:[%s4] sm:$0x1]
        %v483 = vlaneseq
        %v484 = vshrl.u32 %v483, 7
        %v485 = vsub.s32 0, %v484
        %v486 = vrot.slane %v481, %v485
        %v496 = vunpack.c.l.b16 %v473
        %v497 = vunpack.c.l.b16 %v474
        %v498 = vunpack.c.l.b16 %v475
        %v499 = vunpack.c.l.b16 %v476
        %v500 = vunpack.c.l.b16 %v477
        %v501 = vunpack.c.l.b16 %v478
        %v502 = vunpack.c.l.b16 %v479
        %v503 = vunpack.c.l.b16 %v480
        %v504 = vpack.c.b16 %v497, %v496
        %v505 = vpack.c.b16 %v499, %v498
        %v506 = vpack.c.b16 %v501, %v500
        %v507 = vpack.c.b16 %v503, %v502
        %vm512 = vcmask 523264
        %v514 = vsel %vm512, %v465, 0
        %v517 = vsel %vm512, %v466, 0
        %v520 = vsel %vm512, %v467, 0
        %v523 = vsel %vm512, %v468, 0
        %v526 = vsel %vm512, %v469, 0
        %v529 = vsel %vm512, %v470, 0
        %v532 = vsel %vm512, %v471, 0
        %v535 = vsel %vm512, %v472, 0
        %537 = vmatprep.subr.bf16.mxu0 0
        %538 = vmatpush1.bf16.msra.mxu0 %v504
        %539 = vmatprep.subr.bf16.mxu0 0
        %540 = vmatpush1.bf16.msra.mxu0 %v505
        %541 = vmatprep.subr.bf16.mxu0 0
        %542 = vmatpush1.bf16.msra.mxu0 %v506
        %543 = vmatprep.subr.bf16.mxu0 0
        %544 = vmatpush1.bf16.msra.mxu0 %v507
        %545 = vmatprep.subr.bf16.mxu0 0
        %546 = vmatpush1.bf16.msra.mxu0 0
        %547 = vmatprep.subr.bf16.mxu0 0
        %548 = vmatpush1.bf16.msra.mxu0 0
        %549 = vmatprep.subr.bf16.mxu0 0
        %550 = vmatpush1.bf16.msra.mxu0 0
        %551 = vmatprep.subr.bf16.mxu0 0
        %552 = vmatpush1.bf16.msra.mxu0 0
        %553 = vmatprep.subr.bf16.mxu0 0
        %554 = vmatpush1.bf16.msra.mxu0 0
        %555 = vmatprep.subr.bf16.mxu0 0
        %556 = vmatpush1.bf16.msra.mxu0 0
        %557 = vmatprep.subr.bf16.mxu0 0
        %558 = vmatpush1.bf16.msra.mxu0 0
        %559 = vmatprep.subr.bf16.mxu0 0
        %560 = vmatpush1.bf16.msra.mxu0 0
        %561 = vmatprep.subr.bf16.mxu0 0
        %562 = vmatpush1.bf16.msra.mxu0 0
        %563 = vmatprep.subr.bf16.mxu0 0
        %564 = vmatpush1.bf16.msra.mxu0 0
        %565 = vmatprep.subr.bf16.mxu0 0
        %566 = vmatpush1.bf16.msra.mxu0 0
        %567 = vmatprep.subr.bf16.mxu0 0
        %568 = vmatpush1.bf16.msra.mxu0 0
        %569 = vmatprep.mubr.bf16.mxu0 0
        %570 = vmatmul.mubr.bf16.gmra.mrb[0].mxu0 %v514
        %v571 = vpop.f32.mrb[0].mxu0
        %v572 = vadd.f32 %v486, %v571
        %v573 = vpop.f32.mrb[0].mxu0
        %v574 = vpop.f32.mrb[0].mxu0
        %v575 = vadd.f32 %v486, %v574
        %v576 = vpop.f32.mrb[0].mxu0
        %577 = vmatprep.mubr.bf16.mxu0 0
        %578 = vmatmul.mubr.bf16.gmra.mrb[0].mxu0 %v517
        %v579 = vpop.f32.mrb[0].mxu0
        %v580 = vadd.f32 %v486, %v579
        %v581 = vpop.f32.mrb[0].mxu0
        %v582 = vpop.f32.mrb[0].mxu0
        %v583 = vadd.f32 %v486, %v582
        %v584 = vpop.f32.mrb[0].mxu0
        %585 = vmatprep.mubr.bf16.mxu0 0
        %586 = vmatmul.mubr.bf16.gmra.mrb[0].mxu0 %v520
        %v587 = vpop.f32.mrb[0].mxu0
        %v588 = vadd.f32 %v486, %v587
        %v589 = vpop.f32.mrb[0].mxu0
        %v590 = vpop.f32.mrb[0].mxu0
        %v591 = vadd.f32 %v486, %v590
        %v592 = vpop.f32.mrb[0].mxu0
        %593 = vmatprep.mubr.bf16.mxu0 0
        %594 = vmatmul.mubr.bf16.gmra.mrb[0].mxu0 %v523
        %v595 = vpop.f32.mrb[0].mxu0
        %v596 = vadd.f32 %v486, %v595
        %v597 = vpop.f32.mrb[0].mxu0
        %v598 = vpop.f32.mrb[0].mxu0
        %v599 = vadd.f32 %v486, %v598
        %v600 = vpop.f32.mrb[0].mxu0
        %601 = vmatprep.mubr.bf16.mxu0 0
        %602 = vmatmul.mubr.bf16.gmra.mrb[0].mxu0 %v526
        %v603 = vpop.f32.mrb[0].mxu0
        %v604 = vadd.f32 %v486, %v603
        %v605 = vpop.f32.mrb[0].mxu0
        %v606 = vpop.f32.mrb[0].mxu0
        %v607 = vadd.f32 %v486, %v606
        %v608 = vpop.f32.mrb[0].mxu0
        %609 = vmatprep.mubr.bf16.mxu0 0
        %610 = vmatmul.mubr.bf16.gmra.mrb[0].mxu0 %v529
        %v611 = vpop.f32.mrb[0].mxu0
        %v612 = vadd.f32 %v486, %v611
        %v613 = vpop.f32.mrb[0].mxu0
        %v614 = vpop.f32.mrb[0].mxu0
        %v615 = vadd.f32 %v486, %v614
        %v616 = vpop.f32.mrb[0].mxu0
        %617 = vmatprep.mubr.bf16.mxu0 0
        %618 = vmatmul.mubr.bf16.gmra.mrb[0].mxu0 %v532
        %v619 = vpop.f32.mrb[0].mxu0
        %v620 = vadd.f32 %v486, %v619
        %v621 = vpop.f32.mrb[0].mxu0
        %v622 = vpop.f32.mrb[0].mxu0
        %v623 = vadd.f32 %v486, %v622
        %v624 = vpop.f32.mrb[0].mxu0
        %625 = vmatprep.mubr.bf16.mxu0 0
        %626 = vmatmul.mubr.bf16.gmra.mrb[0].mxu0 %v535
        %v627 = vpop.f32.mrb[0].mxu0
        %v628 = vadd.f32 %v486, %v627
        %v629 = vpop.f32.mrb[0].mxu0
        %v630 = vpop.f32.mrb[0].mxu0
        %v631 = vadd.f32 %v486, %v630
        %v632 = vpop.f32.mrb[0].mxu0
        %633 = vdwg.mxu0
        %v634 = vmax.f32 %v572, 0.0
        %v635 = vmax.f32 %v575, 0.0
        %v636 = vmax.f32 %v580, 0.0
        %v637 = vmax.f32 %v583, 0.0
        %v638 = vmax.f32 %v588, 0.0
        %v639 = vmax.f32 %v591, 0.0
        %v640 = vmax.f32 %v596, 0.0
        %v641 = vmax.f32 %v599, 0.0
        %v642 = vmax.f32 %v604, 0.0
        %v643 = vmax.f32 %v607, 0.0
        %v644 = vmax.f32 %v612, 0.0
        %v645 = vmax.f32 %v615, 0.0
        %v646 = vmax.f32 %v620, 0.0
        %v647 = vmax.f32 %v623, 0.0
        %v648 = vmax.f32 %v628, 0.0
        %v649 = vmax.f32 %v631, 0.0
        %v650 = vpack.c.bf16 %v635, %v634
        %v651 = vpack.c.bf16 %v637, %v636
        %v652 = vpack.c.bf16 %v639, %v638
        %v653 = vpack.c.bf16 %v641, %v640
        %v654 = vpack.c.bf16 %v643, %v642
        %v655 = vpack.c.bf16 %v645, %v644
        %v656 = vpack.c.bf16 %v647, %v646
        %v657 = vpack.c.bf16 %v649, %v648
        %v658 = vld [vmem:[%s5] sm:$0xf]
        %v659 = vld [vmem:[%s6] sm:$0xff]
        %661 = vset.pattern.permute.xlu0 0
        %662 = vperm.xlu0 %661, %v659
        %v663 = vpop.permute.xlu0 %662
        %v666 = vsel %vm512, %v658, 0
        %v669 = vsel %vm512, %v650, 0
        %v672 = vsel %vm512, %v651, 0
        %v675 = vsel %vm512, %v652, 0
        %v678 = vsel %vm512, %v653, 0
        %v681 = vsel %vm512, %v654, 0
        %v684 = vsel %vm512, %v655, 0
        %v687 = vsel %vm512, %v656, 0
        %v690 = vsel %vm512, %v657, 0
        %692 = vmatprep.subr.bf16.mxu0 0
        %693 = vmatpush1.bf16.xpose.msra.mxu0 %v669
        %694 = vmatprep.subr.bf16.mxu0 0
        %695 = vmatpush1.bf16.xpose.msra.mxu0 %v672
        %696 = vmatprep.subr.bf16.mxu0 0
        %697 = vmatpush1.bf16.xpose.msra.mxu0 %v675
        %698 = vmatprep.subr.bf16.mxu0 0
        %699 = vmatpush1.bf16.xpose.msra.mxu0 %v678
        %700 = vmatprep.subr.bf16.mxu0 0
        %701 = vmatpush1.bf16.xpose.msra.mxu0 %v681
        %702 = vmatprep.subr.bf16.mxu0 0
        %703 = vmatpush1.bf16.xpose.msra.mxu0 %v684
        %704 = vmatprep.subr.bf16.mxu0 0
        %705 = vmatpush1.bf16.xpose.msra.mxu0 %v687
        %706 = vmatprep.subr.bf16.mxu0 0
        %707 = vmatpush1.bf16.xpose.msra.mxu0 %v690
        %708 = vmatprep.subr.bf16.mxu0 0
        %709 = vmatpush1.bf16.xpose.msra.mxu0 0
        %710 = vmatprep.subr.bf16.mxu0 0
        %711 = vmatpush1.bf16.xpose.msra.mxu0 0
        %712 = vmatprep.subr.bf16.mxu0 0
        %713 = vmatpush1.bf16.xpose.msra.mxu0 0
        %714 = vmatprep.subr.bf16.mxu0 0
        %715 = vmatpush1.bf16.xpose.msra.mxu0 0
        %716 = vmatprep.subr.bf16.mxu0 0
        %717 = vmatpush1.bf16.xpose.msra.mxu0 0
        %718 = vmatprep.subr.bf16.mxu0 0
        %719 = vmatpush1.bf16.xpose.msra.mxu0 0
        %720 = vmatprep.subr.bf16.mxu0 0
        %721 = vmatpush1.bf16.xpose.msra.mxu0 0
        %722 = vmatprep.subr.bf16.mxu0 0
        %723 = vmatpush1.bf16.xpose.msra.mxu0 0
        %724 = vmatprep.mubr.bf16.mxu0 0
        %725 = vmatmul.mubr.bf16.gmra.mrb[0].mxu0 %v666
        %v726 = vpop.f32.mrb[0].mxu0
        %v727 = vadd.f32 %v663, %v726
        %v728 = vpop.f32.mrb[0].mxu0
        %v729 = vpop.f32.mrb[0].mxu0
        %v730 = vpop.f32.mrb[0].mxu0
        %731 = vdwg.mxu0
        %v732 = vxor.u32 %v727, 2147483648
        %v733 = vmul.f32 %v732, 1.442695
        %v734 = vpow.pop %v733
        %v735 = vadd.f32 %v734, 1.0
        %v736 = vrcp.pop %v735
        %v737 = vmul.f32 1.0, %v736
        %738 = vst [vmem:[%s272] sm:$0xff] %v737
        %s739 = sand.u32 %s181, 1
        %s740 = scalar_lea.sflag [#allocation3], %s739
        %s741 = sand.u32 %s181, 1
        %s742 = smul.addr %s741, 8
        %s743 = scalar_lea.vmem [#allocation2], %s742
        // Predicated region
        $region49: #{color_mlp_forward.1} parent=47 // pred_check
          %p744 = pneg %p191
        $region50: #{color_mlp_forward.1} parent=47 // pred_check_branch
          %746 = sbr.rel (%p744) target = $region52
        $region51: #{color_mlp_forward.1} parent=47 // pred_region
          %s748 = ssub.s32 128, 128
          %749 = vsyncadd %s740, %s748
          %s750 = smul.addr %s21, 128
          %s751 = scalar_lea.hbm %s7, %s750
          %s753 = sshll.u32 %s743, 4
          %s754 = int_to_ptr.vmem [resolvable:$true] %s753
          %756 = dma.vmem_to_hbm [thread:$0]  %s754, 128, %s751, %s740
        $region52: #{color_mlp_forward.1} parent=47 // pred_fallthru
          _
      $region48: #{color_mlp_forward.1} parent=5 // pred_fallthru
        _
      %p757 = scmp.le.s32.totalorder 2, %s16
      // Predicated region
      $region53: #{color_mlp_forward.1} parent=5 // pred_check
        %p758 = pneg %p757
      $region54: #{color_mlp_forward.1} parent=5 // pred_check_branch
        %760 = sbr.rel (%p758) target = $region56
      $region55: #{color_mlp_forward.1} parent=5 // pred_region
        %s761 = ssub.s32 %s16, 2
        // Predicated region
        $region57: #{color_mlp_forward.1} parent=55 // pred_check
          %p762 = pneg %p197
        $region58: #{color_mlp_forward.1} parent=55 // pred_check_branch
          %764 = sbr.rel (%p762) target = $region60
        $region59: #{color_mlp_forward.1} parent=55 // pred_region
          %s765 = sand.u32 %s182, 1
          %s766 = scalar_lea.sflag [#allocation3], %s765
          %s767 = sand.u32 %s182, 1
          %s768 = smul.addr %s767, 8
          %s769 = scalar_lea.vmem [#allocation2], %s768
          %770 = dma.done %s766, 128
        $region60: #{color_mlp_forward.1} parent=55 // pred_fallthru
          _
      $region56: #{color_mlp_forward.1} parent=5 // pred_fallthru
        _
    $region6: #{color_mlp_forward.1} parent=1 // loop_footer
      %s20 = sadd.s32 1, %s16
    $region7: #{color_mlp_forward.1} parent=1 // loop_footer_branch
      %15 = sbr.rel target = $region3
    $region8: #{color_mlp_forward.1} parent=1 // loop_exit
      _
    %771 = vsyncpa [#allocation3], 1
    %s772 = scalar_lea.sflag [#allocation3], 1
    %773 = vsyncpa %s772, 1

</llo_original>
